<compile_context>
chip_gen: v5e
topology: v5e:2x2
jax: 0.10.0
libtpu: 0.0.40
codegen_flags: <defaults>
</compile_context>

<pallas_src>
import jax
import jax.numpy as jnp
from jax import lax
from jax.experimental import pallas as pl
from jax.experimental.pallas import tpu as pltpu


_MIB = 1024 * 1024
# Budget per (chunk_rows, C) f32 temporary (x, exp(x-m), masked x) inside a tile.
_CHUNK_TEMP_BYTES = 2 * _MIB


def _cdiv(a, b):
    return -(-a // b)


def _round_up(x, m):
    return _cdiv(x, m) * m


def _vmem_capacity_bytes():
    try:
        info = pltpu.get_tpu_info()
        cap = getattr(info, "vmem_capacity_bytes", None)
        if cap:
            return int(cap)
    except Exception:
        pass
    return 64 * _MIB          # conservative (v7x-sized) fallback


def _plan(n, c, itemsize, tile_rows=None, chunk_rows=None, num_parts=None):
    """Returns (chunk_rows, tile_rows, num_parts, tiles_per_part, n_padded, vmem_limit)."""
    sub = max(8, 32 // itemsize)           # sublane multiple: 8 f32, 16 bf16
    vmem_cap = _vmem_capacity_bytes()
    if vmem_cap >= 96 * _MIB:              # v5e / v6e: 128 MiB physical VMEM
        buf_budget, vmem_limit = 12 * _MIB, 64 * _MIB
    else:                                  # v7x (or unknown): 64 MiB physical VMEM
        buf_budget, vmem_limit = 8 * _MIB, 40 * _MIB

    if chunk_rows is None:
        chunk_rows = (_CHUNK_TEMP_BYTES // max(4 * c, 1)) // sub * sub
        chunk_rows = max(sub, min(chunk_rows, 1024, _round_up(n, sub)))
        if tile_rows is not None:
            cr = max(sub, (min(chunk_rows, tile_rows) // sub) * sub)
            while cr > sub and tile_rows % cr:
                cr -= sub
            chunk_rows = max(sub, cr)
    assert chunk_rows % sub == 0, "chunk_rows must be a sublane multiple"

    # Per-buffer VMEM bytes per row: preds row + the (tile_rows, 1) int32 target
    # block, which is lane-padded to 128 lanes (512 B/row) in VMEM.
    row_bytes = c * itemsize + 512

    if tile_rows is None:
        cap_rows = max(chunk_rows,
                       (buf_budget // row_bytes) // chunk_rows * chunk_rows)
        best_any = best_even = None
        t = chunk_rows
        lim = min(cap_rows, n)
        while t <= lim:
            if n % t == 0:
                best_any = t
                if (n // t) % 2 == 0:
                    best_even = t
            t += chunk_rows
        if best_even is not None:          # largest divisor giving an even tile
            tile_rows = best_even          # count -> 2-core split, zero padding
        elif best_any is not None:
            tile_rows = best_any
        else:                              # no divisor: pad with zero rows (masked)
            n_chunks = _cdiv(n, chunk_rows)
            cap_chunks = max(1, cap_rows // chunk_rows)
            tpp = _cdiv(n_chunks, 2 * cap_chunks)
            tile_rows = _cdiv(n_chunks, 2 * tpp) * chunk_rows
    assert tile_rows % sub == 0 and tile_rows % chunk_rows == 0

    num_tiles = _cdiv(n, tile_rows)
    if num_parts is None:
        if num_tiles >= 2:
            num_parts = 2
            if num_tiles % 2:
                if n % tile_rows == 0:
                    num_parts = 1          # exact fit: keep it copy-free
                else:
                    num_tiles += 1         # already padding: make the count even
        else:
            num_parts = 1
    else:
        num_tiles = _round_up(max(num_tiles, num_parts), num_parts)
    tiles_per_part = num_tiles // num_parts
    n_padded = num_tiles * tile_rows
    return chunk_rows, tile_rows, num_parts, tiles_per_part, n_padded, vmem_limit


def _make_kernel(*, n, c, tile_rows, chunk_rows, tiles_per_part, need_mask):
    n_chunks = tile_rows // chunk_rows

    def kernel(target_ref, preds_ref, loss_out, nll_out, lse_acc, colsum_acc, pick_acc):
        i = pl.program_id(1)
        last = pl.num_programs(1) - 1

        @pl.when(i == 0)
        def _():
            lse_acc[...] = jnp.zeros_like(lse_acc)
            colsum_acc[...] = jnp.zeros_like(colsum_acc)
            pick_acc[...] = jnp.zeros_like(pick_acc)

        # Hoisted out of the chunk loop (broadcast/iota are not CSE'd in loops).
        col = lax.broadcasted_iota(jnp.int32, (chunk_rows, c), 1)
        if need_mask:
            row_iota = lax.broadcasted_iota(jnp.int32, (chunk_rows, 1), 0)
            tile_row0 = (pl.program_id(0) * tiles_per_part + i) * tile_rows

        def process(start):
            x = preds_ref[pl.ds(start, chunk_rows), :].astype(jnp.float32)   # (CR, C)
            t = target_ref[pl.ds(start, chunk_rows), :]                      # (CR, 1)
            # Per-row logsumexp: the only per-row (XLU lane) reductions kept.
            m = jnp.max(x, axis=-1, keepdims=True)
            lse = jnp.log(jnp.sum(jnp.exp(x - m), axis=-1, keepdims=True)) + m
            if need_mask:
                # Zero-padded rows contribute exactly 0 to the column sums but
                # log(C) to lse -> mask them with the global row index.
                rows = tile_row0 + start + row_iota
                lse = jnp.where(rows < n, lse, 0.0)
            # Column-wise (axis-0) accumulation: mostly plain VALU vreg adds;
            # the lane collapse happens once per part in the i==last epilogue.
            lse_acc[...] += jnp.sum(lse, axis=0, keepdims=True)
            colsum_acc[...] += jnp.sum(x, axis=0, keepdims=True)
            pick_acc[...] += jnp.sum(jnp.where(col == t, x, 0.0),
                                     axis=0, keepdims=True)

        if n_chunks == 1:
            process(0)
        else:
            @pl.loop(0, n_chunks, unroll=(n_chunks <= 8))
            def _(ch):
                process(pl.multiple_of(ch * chunk_rows, 8))

        @pl.when(i == last)
        def _():
            s_lse = lse_acc[...]                                       # (1, 1)
            s_x = jnp.sum(colsum_acc[...], axis=-1, keepdims=True)     # (1, 1)
            s_pick = jnp.sum(pick_acc[...], axis=-1, keepdims=True)    # (1, 1)
            #   sum_i -sum_c log_softmax(x)[i, c] = C * sum_i lse_i - sum_{i,c} x
            #   sum_i -log_softmax(x)[i, t_i]     =     sum_i lse_i - sum_i x[i, t_i]
            loss_out[...] = jnp.float32(c) * s_lse - s_x
            nll_out[...] = s_lse - s_pick

    return kernel


def label_smoothing_cross_entropy(preds, target, *, epsilon=0.2, tile_rows=None,
                                  chunk_rows=None, num_parts=None):
    """preds: (N, C) float, target: (N,) int in [0, C). Scalar f32 (reduction='mean')."""
    n, c = preds.shape
    itemsize = int(jnp.dtype(preds.dtype).itemsize)
    (chunk_rows, tile_rows, num_parts, tiles_per_part, n_padded, vmem_limit) = _plan(
        n, c, itemsize, tile_rows=tile_rows, chunk_rows=chunk_rows, num_parts=num_parts)

    pad = n_padded - n
    target_i = target.astype(jnp.int32)
    if pad:
        preds = jnp.pad(preds, ((0, pad), (0, 0)))       # zero rows, masked in-kernel
        target_i = jnp.pad(target_i, ((0, pad),))
    # TODO(synk): a lane-dense (1, tile_rows) target block would avoid the 128x
    # lane padding of this column block; its padded footprint is instead charged
    # to the preds tile budget in _plan().
    target2d = target_i.reshape(n_padded, 1)

    kernel = _make_kernel(n=n, c=c, tile_rows=tile_rows, chunk_rows=chunk_rows,
                          tiles_per_part=tiles_per_part, need_mask=(pad > 0))

    cost = pl.CostEstimate(
        flops=int(6 * n_padded * c),
        transcendentals=int(n_padded * c + n_padded),
        bytes_accessed=int(n_padded * c * itemsize + n_padded * 4 + 2 * num_parts * 4),
    )

    loss_parts, nll_parts = pl.pallas_call(
        kernel,
        out_shape=(jax.ShapeDtypeStruct((num_parts, 1), jnp.float32),
                   jax.ShapeDtypeStruct((num_parts, 1), jnp.float32)),
        grid_spec=pltpu.PrefetchScalarGridSpec(
            num_scalar_prefetch=0,
            grid=(num_parts, tiles_per_part),
            in_specs=[
                pl.BlockSpec((tile_rows, 1),
                             lambda p, i: (p * tiles_per_part + i, 0)),   # target
                pl.BlockSpec((tile_rows, c),
                             lambda p, i: (p * tiles_per_part + i, 0)),   # preds
            ],
            out_specs=[
                pl.BlockSpec((1, 1), lambda p, i: (p, 0)),   # per-part loss sum
                pl.BlockSpec((1, 1), lambda p, i: (p, 0)),   # per-part nll sum
            ],
            scratch_shapes=[
                pltpu.VMEM((1, 1), jnp.float32),   # sum_i lse_i
                pltpu.VMEM((1, c), jnp.float32),   # column sums of x
                pltpu.VMEM((1, c), jnp.float32),   # column sums of one-hot-picked x
            ],
        ),
        compiler_params=pltpu.CompilerParams(
            dimension_semantics=("parallel", "arbitrary"),
            vmem_limit_bytes=vmem_limit),
        cost_estimate=cost,
    )(target2d, preds)

    # reduction='mean' + final epsilon linear combination (scalar work).
    loss_mean = jnp.sum(loss_parts) / jnp.float32(n)
    nll_mean = jnp.sum(nll_parts) / jnp.float32(n)
    return (jnp.float32(epsilon) * (loss_mean / jnp.float32(c))
            + jnp.float32(1.0 - epsilon) * nll_mean)


def _reference(preds, target, epsilon=0.2):
    log_preds = jax.nn.log_softmax(preds.astype(jnp.float32), axis=-1)
    n_classes = preds.shape[-1]
    loss = jnp.mean(-jnp.sum(log_preds, axis=-1))
    nll = jnp.mean(-jnp.take_along_axis(log_preds, target[:, None], axis=-1)[:, 0])
    return epsilon * (loss / n_classes) + (1.0 - epsilon) * nll


if __name__ == "__main__":
    key = jax.random.PRNGKey(0)
    k1, k2, k3, k4, k5, k6 = jax.random.split(key, 6)

    # 1) Small shape consistent with the module's classifier usage: batch 8, 32 classes.
    N, C = 8, 32
    preds = jax.random.normal(k1, (N, C), dtype=jnp.float32)
    target = jax.random.randint(k2, (N,), 0, C, dtype=jnp.int32)
    out = jax.block_until_ready(
        label_smoothing_cross_entropy(preds, target, epsilon=0.2))
    ref = _reference(preds, target, epsilon=0.2)
    assert jnp.allclose(out, ref, rtol=1e-5, atol=1e-5), (out, ref)

    # 2) Multi-tile reduction loop + 2-part "parallel" batch split (no padding).
    N2, C2 = 64, 128
    preds2 = jax.random.normal(k3, (N2, C2), dtype=jnp.float32)
    target2 = jax.random.randint(k4, (N2,), 0, C2, dtype=jnp.int32)
    out2 = jax.block_until_ready(
        label_smoothing_cross_entropy(preds2, target2, epsilon=0.2, tile_rows=16))
    ref2 = _reference(preds2, target2, epsilon=0.2)
    assert jnp.allclose(out2, ref2, rtol=1e-5, atol=1e-5), (out2, ref2)

    # 3) Ragged N: zero-row padding + in-kernel row masking + in-tile chunk loop.
    N3, C3 = 100, 48
    preds3 = jax.random.normal(k5, (N3, C3), dtype=jnp.float32)
    target3 = jax.random.randint(k6, (N3,), 0, C3, dtype=jnp.int32)
    out3 = jax.block_until_ready(
        label_smoothing_cross_entropy(preds3, target3, epsilon=0.2,
                                      tile_rows=24, chunk_rows=8))
    ref3 = _reference(preds3, target3, epsilon=0.2)
    assert jnp.allclose(out3, ref3, rtol=1e-5, atol=1e-5), (out3, ref3)

    print("KERNEL_OK")
</pallas_src>

<mosaic_0001>
module attributes {stable_mosaic.version = 11 : i64} {
  func.func @kernel(%arg0: i32, %arg1: i32, %arg2: memref<8x1xi32, #tpu.memory_space<vmem>>, %arg3: memref<8x32xf32, #tpu.memory_space<vmem>>, %arg4: memref<1x1xf32, #tpu.memory_space<vmem>>, %arg5: memref<1x1xf32, #tpu.memory_space<vmem>>, %arg6: memref<1x1xf32, #tpu.memory_space<vmem>>, %arg7: memref<1x32xf32, #tpu.memory_space<vmem>>, %arg8: memref<1x32xf32, #tpu.memory_space<vmem>>) attributes {dimension_semantics = [#tpu.dimension_semantics<parallel>, #tpu.dimension_semantics<arbitrary>], iteration_bounds = array<i64: 1, 1>, scalar_prefetch = 0 : i64, scratch_operands = 3 : i64, tpu.core_type = #tpu.core_type<tc>, window_params = [{transform_indices = @transform_0, window_bounds = array<i64: 8, 1>}, {transform_indices = @transform_1, window_bounds = array<i64: 8, 32>}, {transform_indices = @transform_2, window_bounds = array<i64: 1, 1>}, {transform_indices = @transform_3, window_bounds = array<i64: 1, 1>}]} {
    %c0_i32 = arith.constant 0 : i32
    %0 = arith.cmpi eq, %arg1, %c0_i32 : i32
    %1 = arith.extui %0 : i1 to i32
    %c0_i32_0 = arith.constant 0 : i32
    %2 = arith.cmpi ne, %1, %c0_i32_0 : i32
    scf.if %2 {
      %cst_23 = arith.constant 0.000000e+00 : f32
      %37 = vector.broadcast %cst_23 : f32 to vector<1x1xf32>
      %c0_24 = arith.constant 0 : index
      %c0_25 = arith.constant 0 : index
      %38 = vector.load %arg6[%c0_24, %c0_25] : memref<1x1xf32, #tpu.memory_space<vmem>>, vector<1x1xf32>
      tpu.vector_store %arg6[%c0_24, %c0_25], %37 {strides = array<i32>} : memref<1x1xf32, #tpu.memory_space<vmem>>, vector<1x1xf32>,
      %cst_26 = arith.constant 0.000000e+00 : f32
      %39 = vector.broadcast %cst_26 : f32 to vector<1x32xf32>
      %c0_27 = arith.constant 0 : index
      %c0_28 = arith.constant 0 : index
      %40 = vector.load %arg7[%c0_27, %c0_28] : memref<1x32xf32, #tpu.memory_space<vmem>>, vector<1x32xf32>
      tpu.vector_store %arg7[%c0_27, %c0_28], %39 {strides = array<i32>} : memref<1x32xf32, #tpu.memory_space<vmem>>, vector<1x32xf32>,
      %cst_29 = arith.constant 0.000000e+00 : f32
      %41 = vector.broadcast %cst_29 : f32 to vector<1x32xf32>
      %c0_30 = arith.constant 0 : index
      %c0_31 = arith.constant 0 : index
      %42 = vector.load %arg8[%c0_30, %c0_31] : memref<1x32xf32, #tpu.memory_space<vmem>>, vector<1x32xf32>
      tpu.vector_store %arg8[%c0_30, %c0_31], %41 {strides = array<i32>} : memref<1x32xf32, #tpu.memory_space<vmem>>, vector<1x32xf32>,
    } else {
    }
    %3 = tpu.iota {dimensions = array<i32: 1>} : vector<8x32xi32>
    %c0 = arith.constant 0 : index
    %c0_1 = arith.constant 0 : index
    %4 = vector.load %arg3[%c0, %c0_1] : memref<8x32xf32, #tpu.memory_space<vmem>>, vector<8x32xf32>
    %c0_2 = arith.constant 0 : index
    %c0_3 = arith.constant 0 : index
    %5 = vector.load %arg2[%c0_2, %c0_3] : memref<8x1xi32, #tpu.memory_space<vmem>>, vector<8x1xi32>
    %cst = arith.constant dense<0xFF800000> : vector<8xf32>
    %6 = vector.multi_reduction <maximumf>, %4, %cst [1] : vector<8x32xf32> to vector<8xf32>
    %7 = vector.shape_cast %6 : vector<8xf32> to vector<8x1xf32>
    %8 = vector.broadcast %7 : vector<8x1xf32> to vector<8x32xf32>
    %9 = arith.subf %4, %8 : vector<8x32xf32>
    %10 = math.exp %9 : vector<8x32xf32>
    %cst_4 = arith.constant dense<0.000000e+00> : vector<8xf32>
    %11 = vector.multi_reduction <add>, %10, %cst_4 [1] : vector<8x32xf32> to vector<8xf32>
    %12 = vector.shape_cast %11 : vector<8xf32> to vector<8x1xf32>
    %13 = math.log %12 : vector<8x1xf32>
    %14 = arith.addf %13, %7 : vector<8x1xf32>
    %c0_5 = arith.constant 0 : index
    %c0_6 = arith.constant 0 : index
    %15 = vector.load %arg6[%c0_5, %c0_6] : memref<1x1xf32, #tpu.memory_space<vmem>>, vector<1x1xf32>
    %cst_7 = arith.constant dense<0.000000e+00> : vector<1xf32>
    %16 = vector.multi_reduction <add>, %14, %cst_7 [0] : vector<8x1xf32> to vector<1xf32>
    %17 = vector.shape_cast %16 : vector<1xf32> to vector<1x1xf32>
    %18 = arith.addf %15, %17 : vector<1x1xf32>
    %c0_8 = arith.constant 0 : index
    %c0_9 = arith.constant 0 : index
    %19 = vector.load %arg6[%c0_8, %c0_9] : memref<1x1xf32, #tpu.memory_space<vmem>>, vector<1x1xf32>
    tpu.vector_store %arg6[%c0_8, %c0_9], %18 {strides = array<i32>} : memref<1x1xf32, #tpu.memory_space<vmem>>, vector<1x1xf32>,
    %c0_10 = arith.constant 0 : index
    %c0_11 = arith.constant 0 : index
    %20 = vector.load %arg7[%c0_10, %c0_11] : memref<1x32xf32, #tpu.memory_space<vmem>>, vector<1x32xf32>
    %cst_12 = arith.constant dense<0.000000e+00> : vector<32xf32>
    %21 = vector.multi_reduction <add>, %4, %cst_12 [0] : vector<8x32xf32> to vector<32xf32>
    %22 = vector.shape_cast %21 : vector<32xf32> to vector<1x32xf32>
    %23 = arith.addf %20, %22 : vector<1x32xf32>
    %c0_13 = arith.constant 0 : index
    %c0_14 = arith.constant 0 : index
    %24 = vector.load %arg7[%c0_13, %c0_14] : memref<1x32xf32, #tpu.memory_space<vmem>>, vector<1x32xf32>
    tpu.vector_store %arg7[%c0_13, %c0_14], %23 {strides = array<i32>} : memref<1x32xf32, #tpu.memory_space<vmem>>, vector<1x32xf32>,
    %c0_15 = arith.constant 0 : index
    %c0_16 = arith.constant 0 : index
    %25 = vector.load %arg8[%c0_15, %c0_16] : memref<1x32xf32, #tpu.memory_space<vmem>>, vector<1x32xf32>
    %26 = vector.broadcast %5 : vector<8x1xi32> to vector<8x32xi32>
    %27 = arith.cmpi eq, %3, %26 : vector<8x32xi32>
    %cst_17 = arith.constant 0.000000e+00 : f32
    %28 = vector.broadcast %cst_17 : f32 to vector<8x32xf32>
    %29 = arith.select %27, %4, %28 : vector<8x32xi1>, vector<8x32xf32>
    %cst_18 = arith.constant dense<0.000000e+00> : vector<32xf32>
    %30 = vector.multi_reduction <add>, %29, %cst_18 [0] : vector<8x32xf32> to vector<32xf32>
    %31 = vector.shape_cast %30 : vector<32xf32> to vector<1x32xf32>
    %32 = arith.addf %25, %31 : vector<1x32xf32>
    %c0_19 = arith.constant 0 : index
    %c0_20 = arith.constant 0 : index
    %33 = vector.load %arg8[%c0_19, %c0_20] : memref<1x32xf32, #tpu.memory_space<vmem>>, vector<1x32xf32>
    tpu.vector_store %arg8[%c0_19, %c0_20], %32 {strides = array<i32>} : memref<1x32xf32, #tpu.memory_space<vmem>>, vector<1x32xf32>,
    %c0_i32_21 = arith.constant 0 : i32
    %34 = arith.cmpi eq, %arg1, %c0_i32_21 : i32
    %35 = arith.extui %34 : i1 to i32
    %c0_i32_22 = arith.constant 0 : i32
    %36 = arith.cmpi ne, %35, %c0_i32_22 : i32
    scf.if %36 {
      %c0_23 = arith.constant 0 : index
      %c0_24 = arith.constant 0 : index
      %37 = vector.load %arg6[%c0_23, %c0_24] : memref<1x1xf32, #tpu.memory_space<vmem>>, vector<1x1xf32>
      %c0_25 = arith.constant 0 : index
      %c0_26 = arith.constant 0 : index
      %38 = vector.load %arg7[%c0_25, %c0_26] : memref<1x32xf32, #tpu.memory_space<vmem>>, vector<1x32xf32>
      %cst_27 = arith.constant dense<0.000000e+00> : vector<1xf32>
      %39 = vector.multi_reduction <add>, %38, %cst_27 [1] : vector<1x32xf32> to vector<1xf32>
      %40 = vector.shape_cast %39 : vector<1xf32> to vector<1x1xf32>
      %c0_28 = arith.constant 0 : index
      %c0_29 = arith.constant 0 : index
      %41 = vector.load %arg8[%c0_28, %c0_29] : memref<1x32xf32, #tpu.memory_space<vmem>>, vector<1x32xf32>
      %cst_30 = arith.constant dense<0.000000e+00> : vector<1xf32>
      %42 = vector.multi_reduction <add>, %41, %cst_30 [1] : vector<1x32xf32> to vector<1xf32>
      %43 = vector.shape_cast %42 : vector<1xf32> to vector<1x1xf32>
      %cst_31 = arith.constant 3.200000e+01 : f32
      %44 = vector.broadcast %cst_31 : f32 to vector<1x1xf32>
      %45 = arith.mulf %44, %37 : vector<1x1xf32>
      %46 = arith.subf %45, %40 : vector<1x1xf32>
      %c0_32 = arith.constant 0 : index
      %c0_33 = arith.constant 0 : index
      %47 = vector.load %arg4[%c0_32, %c0_33] : memref<1x1xf32, #tpu.memory_space<vmem>>, vector<1x1xf32>
      tpu.vector_store %arg4[%c0_32, %c0_33], %46 {strides = array<i32>} : memref<1x1xf32, #tpu.memory_space<vmem>>, vector<1x1xf32>,
      %48 = arith.subf %37, %43 : vector<1x1xf32>
      %c0_34 = arith.constant 0 : index
      %c0_35 = arith.constant 0 : index
      %49 = vector.load %arg5[%c0_34, %c0_35] : memref<1x1xf32, #tpu.memory_space<vmem>>, vector<1x1xf32>
      tpu.vector_store %arg5[%c0_34, %c0_35], %48 {strides = array<i32>} : memref<1x1xf32, #tpu.memory_space<vmem>>, vector<1x1xf32>,
    } else {
    }
    return
  }
  func.func @transform_0(%arg0: i32, %arg1: i32) -> (i32, i32) {
    %c1_i32 = arith.constant 1 : i32
    %0 = arith.muli %arg0, %c1_i32 : i32
    %1 = arith.addi %0, %arg1 : i32
    %c0_i32 = arith.constant 0 : i32
    %c0_i32_0 = arith.constant 0 : i32
    return %1, %c0_i32 : i32, i32
  }
  func.func @transform_1(%arg0: i32, %arg1: i32) -> (i32, i32) {
    %c1_i32 = arith.constant 1 : i32
    %0 = arith.muli %arg0, %c1_i32 : i32
    %1 = arith.addi %0, %arg1 : i32
    %c0_i32 = arith.constant 0 : i32
    %c0_i32_0 = arith.constant 0 : i32
    return %1, %c0_i32 : i32, i32
  }
  func.func @transform_2(%arg0: i32, %arg1: i32) -> (i32, i32) {
    %c0_i32 = arith.constant 0 : i32
    %c0_i32_0 = arith.constant 0 : i32
    return %arg0, %c0_i32 : i32, i32
  }
  func.func @transform_3(%arg0: i32, %arg1: i32) -> (i32, i32) {
    %c0_i32 = arith.constant 0 : i32
    %c0_i32_0 = arith.constant 0 : i32
    return %arg0, %c0_i32 : i32, i32
  }
}

</mosaic_0001>

<llo_original>
// kernel: tpu_custom_call.1
$region0: #{tpu_custom_call.1}
  #allocation0 [shape = 'u32[]', space=smem, size = 0x4, offset = 0x4, fixed_abs, tag = 'smem constant byte address 0x4 - core index']
  #allocation1 [shape = 'u32[72,128]{1,0:T(1,128)}', space=vmem, size = 0x9000, scoped, tag = 'internal scratch']
  #allocation2 [shape = 'f32[1,1]{1,0:T(1,128)}', space=vmem, size = 0x200, scoped, tag = 'scratch operand']
  #allocation3 [shape = 'f32[1,32]{1,0:T(1,128)}', space=vmem, size = 0x200, scoped, tag = 'scratch operand']
  #allocation4 [shape = 'f32[1,32]{1,0:T(1,128)}', space=vmem, size = 0x200, scoped, tag = 'scratch operand']
  %s0 = inlined_call_operand.vmem [shape: s32[8,1], index: 0, kind: input, shape index: {}]
  %s1 = inlined_call_operand.vmem [shape: f32[8,32], index: 1, kind: input, shape index: {}]
  %s2 = inlined_call_operand.hbm [shape: f32[1,1], index: 2, kind: output, shape index: {0}]
  %s3 = inlined_call_operand.hbm [shape: f32[1,1], index: 3, kind: output, shape index: {1}]
  %4 = xla_tuple %s2, %s3
  %s5 = sld [smem:[#allocation0]]
  $region34: #{tpu_custom_call.1} parent=0
    _
  %s7 = ssub.s32 1, %s5
  %s8 = scalar_select 0, %s7, %s5
  $region1: #{tpu_custom_call.1} parent=0
    #allocation5 [shape = 'u8[512]{0}', space=vmem, size = 0x400, scoped, tag = 'output window, operand 0, single buffered']
    #allocation6 [shape = 's32[1]{0}', space=sflag, size = 0x4, scoped, tag = 'scoped memory for tpu_custom_call.1']
    #allocation7 [shape = 'u8[512]{0}', space=vmem, size = 0x400, scoped, tag = 'output window, operand 1, single buffered']
    #allocation8 [shape = 's32[1]{0}', space=sflag, size = 0x4, scoped, tag = 'scoped memory for tpu_custom_call.1']
    %9 = vsyncpa [#allocation6], 0
    %10 = vsyncpa [#allocation8], 0
    // Predicated region
    $region2: #{tpu_custom_call.1} parent=1 // pred_check
      _
    $region3: #{tpu_custom_call.1} parent=1 // pred_check_branch
      %12 = sbr.rel (0) target = $region5
    $region4: #{tpu_custom_call.1} parent=1 // pred_region
      %s13 = sadd.s32 0, 0
      %p14 = scmp.lt.s32.totalorder %s13, 0
      %s15 = scalar_select %p14, %s13, 0
      %s16 = smul.addr %s15, 8
      %s17 = scalar_lea.vmem %s0, %s16
      %s18 = sadd.s32 0, 0
    $region5: #{tpu_custom_call.1} parent=1 // pred_fallthru
      _
    // Predicated region
    $region6: #{tpu_custom_call.1} parent=1 // pred_check
      _
    $region7: #{tpu_custom_call.1} parent=1 // pred_check_branch
      %20 = sbr.rel (0) target = $region9
    $region8: #{tpu_custom_call.1} parent=1 // pred_region
      %s21 = sadd.s32 0, 0
      %p22 = scmp.lt.s32.totalorder %s21, 0
      %s23 = scalar_select %p22, %s21, 0
      %s24 = smul.addr %s23, 8
      %s25 = scalar_lea.vmem %s1, %s24
      %s26 = sadd.s32 0, 0
    $region9: #{tpu_custom_call.1} parent=1 // pred_fallthru
      _
    %s27 = sadd.s32 0, 0
    %p28 = scmp.lt.s32.totalorder %s27, 0
    %s29 = scalar_select %p28, %s27, 0
    %s30 = smul.addr %s29, 8
    %s31 = scalar_lea.vmem %s0, %s30
    %s32 = sadd.s32 0, 0
    %p33 = scmp.lt.s32.totalorder %s32, 0
    %s34 = scalar_select %p33, %s32, 0
    %s35 = smul.addr %s34, 8
    %s36 = scalar_lea.vmem %s1, %s35
    %s37 = sadd.s32 0, 0
    %p38 = scmp.lt.s32.totalorder %s37, 0
    %s39 = scalar_select %p38, %s37, 0
    %s40 = smul.addr %s39, 8
    %s41 = scalar_lea.vmem %s0, %s40
    %s42 = sadd.s32 0, 0
    %s43 = sadd.s32 0, 0
    %p44 = scmp.lt.s32.totalorder %s43, 0
    %s45 = scalar_select %p44, %s43, 0
    %s46 = smul.addr %s45, 8
    %s47 = scalar_lea.vmem %s1, %s46
    %s48 = sadd.s32 0, 0
    %p49 = scmp.eq.s32.totalorder 0, 0
    // Predicated region
    $region10: #{tpu_custom_call.1} parent=1 // pred_check
      %p50 = pneg %p49
    $region11: #{tpu_custom_call.1} parent=1 // pred_check_branch
      %52 = sbr.rel (%p50) target = $region13
    $region12: #{tpu_custom_call.1} parent=1 // pred_region
      %vm53 = vcmask 0
      %54 = vst.msk [vmem:[#allocation2] sm:$0x1] %vm53, 0.0
      %vm55 = vcmask 253952
      %56 = vst.msk [vmem:[#allocation3] sm:$0x1] %vm55, 0.0
      %57 = vst.msk [vmem:[#allocation4] sm:$0x1] %vm55, 0.0
    $region13: #{tpu_custom_call.1} parent=1 // pred_fallthru
      _
    %v58 = vlaneseq
    %v59 = vand.u32 %v58, 127
    %v60 = vld [vmem:[%s47] sm:$0xff]
    %v61 = vld [vmem:[%s41] sm:$0xff]
    %vm62 = vcmask 261120
    %v63 = vsel %vm62, %v60, -inf
    %64 = vmax.xlane.f32.xlu0 %v63
    %v65 = vpop.xlane.xlu0 %64
    %v66 = vsub.f32 %v60, %v65
    %v67 = vmul.f32 %v66, 1.442695
    %v68 = vpow.pop %v67
    %v69 = vsel %vm62, %v68, 0.0
    %70 = vadd.xlane.f32.xlu0 %v69
    %v71 = vpop.xlane.xlu0 %70
    %v72 = vlog2.pop %v71
    %v73 = vmul.f32 %v72, 0.6931472
    %v74 = vadd.f32 %v73, %v65
    %v75 = vld [vmem:[#allocation2] sm:$0x1]
    %v76 = vrot.slane %v74, 4
    %v77 = vadd.f32 %v74, %v76
    %v78 = vrot.slane %v77, 2
    %v79 = vadd.f32 %v77, %v78
    %v80 = vrot.slane %v79, 1
    %v81 = vadd.f32 %v79, %v80
    %v82 = vadd.f32 %v75, %v81
    %vm83 = vcmask 0
    %84 = vst.msk [vmem:[#allocation2] sm:$0x1] %vm83, %v82
    %v85 = vld [vmem:[#allocation3] sm:$0x1]
    %v86 = vsel %vm62, %v60, 0.0
    %v87 = vrot.slane %v86, 4
    %v88 = vadd.f32 %v86, %v87
    %v89 = vrot.slane %v88, 2
    %v90 = vadd.f32 %v88, %v89
    %v91 = vrot.slane %v90, 1
    %v92 = vadd.f32 %v90, %v91
    %v93 = vadd.f32 %v85, %v92
    %vm94 = vcmask 253952
    %95 = vst.msk [vmem:[#allocation3] sm:$0x1] %vm94, %v93
    %v96 = vld [vmem:[#allocation4] sm:$0x1]
    %97 = vset.pattern.permute.xlu0 0
    %98 = vperm.xlu0 %97, %v61
    %v99 = vpop.permute.xlu0 %98
    %vm100 = vcmp.eq.s32.totalorder %v59, %v99
    %v101 = vsel %vm100, %v60, 0.0
    %v102 = vsel %vm62, %v101, 0.0
    %v103 = vrot.slane %v102, 4
    %v104 = vadd.f32 %v102, %v103
    %v105 = vrot.slane %v104, 2
    %v106 = vadd.f32 %v104, %v105
    %v107 = vrot.slane %v106, 1
    %v108 = vadd.f32 %v106, %v107
    %v109 = vadd.f32 %v96, %v108
    %110 = vst.msk [vmem:[#allocation4] sm:$0x1] %vm94, %v109
    // Predicated region
    $region14: #{tpu_custom_call.1} parent=1 // pred_check
      %p111 = pneg %p49
    $region15: #{tpu_custom_call.1} parent=1 // pred_check_branch
      %113 = sbr.rel (%p111) target = $region17
    $region16: #{tpu_custom_call.1} parent=1 // pred_region
      %v114 = vld [vmem:[#allocation2] sm:$0x1]
      %v115 = vld [vmem:[#allocation3] sm:$0x1]
      %v116 = vsel %vm94, %v115, 0.0
      %117 = vadd.xlane.f32.xlu0 %v116
      %v118 = vpop.xlane.xlu0 %117
      %v119 = vld [vmem:[#allocation4] sm:$0x1]
      %v120 = vsel %vm94, %v119, 0.0
      %121 = vadd.xlane.f32.xlu0 %v120
      %v122 = vpop.xlane.xlu0 %121
      %v123 = vmul.f32 %v114, 32.0
      %v124 = vsub.f32 %v123, %v118
      %125 = vst.msk [vmem:[#allocation5] sm:$0x1] %vm83, %v124
      %v126 = vsub.f32 %v114, %v122
      %127 = vst.msk [vmem:[#allocation7] sm:$0x1] %vm83, %v126
    $region17: #{tpu_custom_call.1} parent=1 // pred_fallthru
      _
    // Predicated region
    $region18: #{tpu_custom_call.1} parent=1 // pred_check
      _
    $region19: #{tpu_custom_call.1} parent=1 // pred_check_branch
      %129 = sbr.rel (0) target = $region21
    $region20: #{tpu_custom_call.1} parent=1 // pred_region
      %131 = vsyncadd [#allocation6], 0
      %s133 = sshll.u32 [#allocation5], 4
      %s134 = int_to_ptr.vmem [resolvable:$true] %s133
      %s135 = sshll.u32 %s2, 4
      %s136 = int_to_ptr.hbm [resolvable:$true] %s135
      %138 = dma.vmem_to_hbm [thread:$0]  %s134, 16, %s136, [#allocation6]
    $region21: #{tpu_custom_call.1} parent=1 // pred_fallthru
      _
    // Predicated region
    $region22: #{tpu_custom_call.1} parent=1 // pred_check
      _
    $region23: #{tpu_custom_call.1} parent=1 // pred_check_branch
      %140 = sbr.rel (0) target = $region25
    $region24: #{tpu_custom_call.1} parent=1 // pred_region
      %142 = vsyncadd [#allocation8], 0
      %s144 = sshll.u32 [#allocation7], 4
      %s145 = int_to_ptr.vmem [resolvable:$true] %s144
      %s146 = sshll.u32 %s3, 4
      %s147 = int_to_ptr.hbm [resolvable:$true] %s146
      %149 = dma.vmem_to_hbm [thread:$0]  %s145, 16, %s147, [#allocation8]
    $region25: #{tpu_custom_call.1} parent=1 // pred_fallthru
      _
    // Predicated region
    $region26: #{tpu_custom_call.1} parent=1 // pred_check
      _
    $region27: #{tpu_custom_call.1} parent=1 // pred_check_branch
      %151 = sbr.rel (0) target = $region29
    $region28: #{tpu_custom_call.1} parent=1 // pred_region
      %153 = dma.done [#allocation6], 16
    $region29: #{tpu_custom_call.1} parent=1 // pred_fallthru
      _
    // Predicated region
    $region30: #{tpu_custom_call.1} parent=1 // pred_check
      _
    $region31: #{tpu_custom_call.1} parent=1 // pred_check_branch
      %155 = sbr.rel (0) target = $region33
    $region32: #{tpu_custom_call.1} parent=1 // pred_region
      %157 = dma.done [#allocation8], 16
    $region33: #{tpu_custom_call.1} parent=1 // pred_fallthru
      _
    %158 = vsyncpa [#allocation6], 1
    %159 = vsyncpa [#allocation8], 1

</llo_original>
